<compile_context>
chip_gen: v7x
topology: tpu7x:2x2x1
jax: 0.10.0
libtpu: 0.0.40
codegen_flags: <defaults>
</compile_context>

<pallas_src>
import functools

import jax
import jax.numpy as jnp
from jax import lax
from jax.experimental import pallas as pl
from jax.experimental.pallas import tpu as pltpu

# Contract the minor dim of both operands: (M, K) x (N, K) -> (M, N).
_NT_DIMS = (((1,), (1,)), ((), ()))


def _round_up(n, m):
    return ((n + m - 1) // m) * m


def _pick_batch_tile(batch, tb_max, sub):
    """Batch-tile size: a multiple of `sub`, capped at tb_max, and yielding at
    least 2 grid steps once the batch is big enough (keeps v7x's second
    TensorCore busy and lets the x DMA pipeline)."""
    tb_max = max(sub, (tb_max // sub) * sub)
    if batch <= sub:
        return sub
    two_step = _round_up(pl.cdiv(batch, 2), sub)
    return min(tb_max, two_step)


def mlp_kernel(x_ref, w1_ref, b1_ref, w2_ref, b2_ref, w3_ref, b3_ref, o_ref,
               *, sub):
    """One batch tile.

      x_ref : (tb, 4)  f32   natural PyTorch layout (batch on sublanes)
      w1    : (64, 4)  f32,  b1: (64, 1) f32
      w2    : (32, 64) bf16, b2: (32, 1) f32
      w3    : (1, 32)  bf16, b3: (1, 1)  f32
      o_ref : (1, tb)  f32   batch on lanes (lane-dense stores)
    """
    w1 = w1_ref[...]
    b1 = b1_ref[...]
    w2 = w2_ref[...]
    b2 = b2_ref[...]
    w3 = w3_ref[...]
    b3 = b3_ref[...]

    n_sub = x_ref.shape[0] // sub

    def body(j, carry):
        js = pl.multiple_of(j * sub, sub)
        x_sub = x_ref[pl.ds(js, sub), :]                          # (sub, 4)
        # fc1: w1 @ x_sub^T -> (64, sub); batch lands on lanes.  f32, K = 4.
        h1 = lax.dot_general(w1, x_sub, _NT_DIMS,
                             preferred_element_type=jnp.float32)
        h1 = jnp.maximum(h1 + b1, 0.0)
        # fc2: bf16 MXU operands, f32 accumulate, f32 bias + ReLU.
        h2 = jnp.dot(w2, h1.astype(jnp.bfloat16),
                     preferred_element_type=jnp.float32)          # (32, sub)
        h2 = jnp.maximum(h2 + b2, 0.0)
        # fc3
        y = jnp.dot(w3, h2.astype(jnp.bfloat16),
                    preferred_element_type=jnp.float32)           # (1, sub)
        o_ref[:, pl.ds(js, sub)] = (y + b3).astype(o_ref.dtype)
        return carry

    lax.fori_loop(0, n_sub, body, 0, unroll=True)


def mlp_forward(x, params, *, tb=8192, sub=256):
    """x: [B, 4] float32 (PyTorch layout).  Returns [B, 1] float32.

    params: nn.Linear native layouts —
      w1 [64, 4], b1 [64, 1], w2 [32, 64], b2 [32, 1], w3 [1, 32], b3 [1, 1].
    """
    B, fin = x.shape
    assert fin == 4, "expected 4 input features"

    w1 = params["w1"].astype(jnp.float32)
    b1 = params["b1"].astype(jnp.float32)
    w2 = params["w2"].astype(jnp.bfloat16)    # bf16 MXU operand
    b2 = params["b2"].astype(jnp.float32)
    w3 = params["w3"].astype(jnp.bfloat16)    # bf16 MXU operand
    b3 = params["b3"].astype(jnp.float32)

    tb = _pick_batch_tile(B, tb, sub)
    grid = (pl.cdiv(B, tb),)

    flops = 2 * B * (4 * 64 + 64 * 32 + 32 * 1)
    param_bytes = sum(int(a.size) * a.dtype.itemsize
                      for a in (w1, b1, w2, b2, w3, b3))
    bytes_accessed = B * fin * 4 + B * 4 + param_bytes

    out = pl.pallas_call(
        functools.partial(mlp_kernel, sub=sub),
        out_shape=jax.ShapeDtypeStruct((1, B), jnp.float32),
        grid_spec=pltpu.PrefetchScalarGridSpec(
            num_scalar_prefetch=0,
            grid=grid,
            in_specs=[
                pl.BlockSpec((tb, fin), lambda i: (i, 0)),   # x row-tile
                pl.BlockSpec((64, 4), lambda i: (0, 0)),     # w1 (resident)
                pl.BlockSpec((64, 1), lambda i: (0, 0)),     # b1
                pl.BlockSpec((32, 64), lambda i: (0, 0)),    # w2
                pl.BlockSpec((32, 1), lambda i: (0, 0)),     # b2
                pl.BlockSpec((1, 32), lambda i: (0, 0)),     # w3
                pl.BlockSpec((1, 1), lambda i: (0, 0)),      # b3
            ],
            out_specs=pl.BlockSpec((1, tb), lambda i: (0, i)),
        ),
        compiler_params=pltpu.CompilerParams(
            dimension_semantics=("parallel",),
        ),
        cost_estimate=pl.CostEstimate(
            flops=flops, transcendentals=0, bytes_accessed=bytes_accessed),
    )(x, w1, b1, w2, b2, w3, b3)

    # Lane-dense (1, B) kernel output -> PyTorch's [B, 1] (free reshape).
    return out.reshape(B, 1)


def init_params(key):
    """nn.Linear-style U(-1/sqrt(fan_in), 1/sqrt(fan_in)) init, [out, in] layout."""
    dims = [(4, 64), (64, 32), (32, 1)]
    params = {}
    for idx, (fan_in, fan_out) in enumerate(dims, start=1):
        key, kw, kb = jax.random.split(key, 3)
        bound = 1.0 / float(fan_in) ** 0.5
        params[f"w{idx}"] = jax.random.uniform(
            kw, (fan_out, fan_in), jnp.float32, minval=-bound, maxval=bound)
        params[f"b{idx}"] = jax.random.uniform(
            kb, (fan_out, 1), jnp.float32, minval=-bound, maxval=bound)
    return params


def _dot(a, b):
    return jnp.dot(a, b, precision=lax.Precision.HIGHEST)


def mlp_reference_f32(x, p):
    """Full-f32 reference of the PyTorch module."""
    h1 = jnp.maximum(_dot(x, p["w1"].T) + p["b1"].T, 0.0)
    h2 = jnp.maximum(_dot(h1, p["w2"].T) + p["b2"].T, 0.0)
    return _dot(h2, p["w3"].T) + p["b3"].T


def mlp_reference_mixed(x, p):
    """Precision-matched reference (f32 fc1, bf16 fc2/fc3 operands, f32 accum)."""
    bf = lambda a: a.astype(jnp.bfloat16).astype(jnp.float32)
    h1 = jnp.maximum(_dot(x, p["w1"].T) + p["b1"].T, 0.0)
    h2 = jnp.maximum(_dot(bf(h1), bf(p["w2"]).T) + p["b2"].T, 0.0)
    return _dot(bf(h2), bf(p["w3"]).T) + p["b3"].T


if __name__ == "__main__":
    key = jax.random.PRNGKey(0)
    k_params, k_x = jax.random.split(key)
    params = init_params(k_params)

    # Small-but-representative batch: 2 grid steps, multi-sub-tile inner loop,
    # and a partial (boundary-masked) last tile.
    batch = 1000
    x = jax.random.normal(k_x, (batch, 4), dtype=jnp.float32)

    out = jax.block_until_ready(mlp_forward(x, params))
    assert out.shape == (batch, 1)

    ref_mixed = mlp_reference_mixed(x, params)   # same precision as the kernel
    ref_f32 = mlp_reference_f32(x, params)       # module's full-f32 semantics
    assert jnp.allclose(out, ref_mixed, atol=5e-3, rtol=5e-3), (
        "max |err| vs mixed-precision ref = %e"
        % float(jnp.max(jnp.abs(out - ref_mixed))))
    assert jnp.allclose(out, ref_f32, atol=5e-2, rtol=5e-2), (
        "max |err| vs f32 ref = %e" % float(jnp.max(jnp.abs(out - ref_f32))))

    print("KERNEL_OK")
</pallas_src>

<mosaic_0001>
module attributes {stable_mosaic.version = 11 : i64} {
  func.func @mlp_kernel(%arg0: i32, %arg1: memref<512x4xf32, #tpu.memory_space<vmem>>, %arg2: memref<64x4xf32, #tpu.memory_space<vmem>>, %arg3: memref<64x1xf32, #tpu.memory_space<vmem>>, %arg4: memref<32x64xbf16, #tpu.memory_space<vmem>>, %arg5: memref<32x1xf32, #tpu.memory_space<vmem>>, %arg6: memref<1x32xbf16, #tpu.memory_space<vmem>>, %arg7: memref<1x1xf32, #tpu.memory_space<vmem>>, %arg8: memref<1x512xf32, #tpu.memory_space<vmem>>) attributes {dimension_semantics = [#tpu.dimension_semantics<parallel>], iteration_bounds = array<i64: 2>, scalar_prefetch = 0 : i64, scratch_operands = 0 : i64, tpu.core_type = #tpu.core_type<tc>, window_params = [{transform_indices = @transform_0, window_bounds = array<i64: 512, 4>}, {pipeline_mode = #tpu.pipeline_mode<synchronous>, transform_indices = @transform_1, window_bounds = array<i64: 64, 4>}, {pipeline_mode = #tpu.pipeline_mode<synchronous>, transform_indices = @transform_2, window_bounds = array<i64: 64, 1>}, {pipeline_mode = #tpu.pipeline_mode<synchronous>, transform_indices = @transform_3, window_bounds = array<i64: 32, 64>}, {pipeline_mode = #tpu.pipeline_mode<synchronous>, transform_indices = @transform_4, window_bounds = array<i64: 32, 1>}, {pipeline_mode = #tpu.pipeline_mode<synchronous>, transform_indices = @transform_5, window_bounds = array<i64: 1, 32>}, {pipeline_mode = #tpu.pipeline_mode<synchronous>, transform_indices = @transform_6, window_bounds = array<i64: 1, 1>}, {transform_indices = @transform_7, window_bounds = array<i64: 1, 512>}]} {
    %c0 = arith.constant 0 : index
    %c0_0 = arith.constant 0 : index
    %0 = vector.load %arg2[%c0, %c0_0] : memref<64x4xf32, #tpu.memory_space<vmem>>, vector<64x4xf32>
    %c0_1 = arith.constant 0 : index
    %c0_2 = arith.constant 0 : index
    %1 = vector.load %arg3[%c0_1, %c0_2] : memref<64x1xf32, #tpu.memory_space<vmem>>, vector<64x1xf32>
    %c0_3 = arith.constant 0 : index
    %c0_4 = arith.constant 0 : index
    %2 = vector.load %arg4[%c0_3, %c0_4] : memref<32x64xbf16, #tpu.memory_space<vmem>>, vector<32x64xbf16>
    %c0_5 = arith.constant 0 : index
    %c0_6 = arith.constant 0 : index
    %3 = vector.load %arg5[%c0_5, %c0_6] : memref<32x1xf32, #tpu.memory_space<vmem>>, vector<32x1xf32>
    %c0_7 = arith.constant 0 : index
    %c0_8 = arith.constant 0 : index
    %4 = vector.load %arg6[%c0_7, %c0_8] : memref<1x32xbf16, #tpu.memory_space<vmem>>, vector<1x32xbf16>
    %c0_9 = arith.constant 0 : index
    %c0_10 = arith.constant 0 : index
    %5 = vector.load %arg7[%c0_9, %c0_10] : memref<1x1xf32, #tpu.memory_space<vmem>>, vector<1x1xf32>
    %c0_i32 = arith.constant 0 : i32
    %c256_i32 = arith.constant 256 : i32
    %6 = arith.muli %c0_i32, %c256_i32 : i32
    %7 = tpu.assume_multiple %6, 256 : i32
    %8 = arith.index_cast %7 : i32 to index
    %c0_11 = arith.constant 0 : index
    %9 = vector.load %arg1[%8, %c0_11] : memref<512x4xf32, #tpu.memory_space<vmem>>, vector<256x4xf32>
    %cst = arith.constant dense<0.000000e+00> : vector<64x256xf32>
    %10 = tpu.matmul %0, %9, %cst {dimension_numbers = #tpu.dot_dimension_numbers<[1], [1], [0], [0], [0, 0, 1, 0], [], []>} : vector<64x4xf32>, vector<256x4xf32>, vector<64x256xf32> -> vector<64x256xf32>
    %11 = vector.broadcast %1 : vector<64x1xf32> to vector<64x256xf32>
    %12 = arith.addf %10, %11 : vector<64x256xf32>
    %cst_12 = arith.constant 0.000000e+00 : f32
    %13 = vector.broadcast %cst_12 : f32 to vector<64x256xf32>
    %14 = arith.maximumf %12, %13 : vector<64x256xf32>
    %15 = arith.truncf %14 : vector<64x256xf32> to vector<64x256xbf16>
    %cst_13 = arith.constant dense<0.000000e+00> : vector<32x256xf32>
    %16 = tpu.matmul %2, %15, %cst_13 {dimension_numbers = #tpu.dot_dimension_numbers<[1], [0], [0], [1], [0, 0, 1, 1], [], []>} : vector<32x64xbf16>, vector<64x256xbf16>, vector<32x256xf32> -> vector<32x256xf32>
    %17 = vector.broadcast %3 : vector<32x1xf32> to vector<32x256xf32>
    %18 = arith.addf %16, %17 : vector<32x256xf32>
    %cst_14 = arith.constant 0.000000e+00 : f32
    %19 = vector.broadcast %cst_14 : f32 to vector<32x256xf32>
    %20 = arith.maximumf %18, %19 : vector<32x256xf32>
    %21 = arith.truncf %20 : vector<32x256xf32> to vector<32x256xbf16>
    %cst_15 = arith.constant dense<0.000000e+00> : vector<1x256xf32>
    %22 = tpu.matmul %4, %21, %cst_15 {dimension_numbers = #tpu.dot_dimension_numbers<[1], [0], [0], [1], [0, 0, 1, 1], [], []>} : vector<1x32xbf16>, vector<32x256xbf16>, vector<1x256xf32> -> vector<1x256xf32>
    %23 = vector.broadcast %5 : vector<1x1xf32> to vector<1x256xf32>
    %24 = arith.addf %22, %23 : vector<1x256xf32>
    %c0_16 = arith.constant 0 : index
    %25 = arith.index_cast %7 : i32 to index
    %26 = vector.load %arg8[%c0_16, %25] : memref<1x512xf32, #tpu.memory_space<vmem>>, vector<1x256xf32>
    tpu.vector_store %arg8[%c0_16, %25], %24 {strides = array<i32>} : memref<1x512xf32, #tpu.memory_space<vmem>>, vector<1x256xf32>,
    %c1_i32 = arith.constant 1 : i32
    %c256_i32_17 = arith.constant 256 : i32
    %27 = arith.muli %c1_i32, %c256_i32_17 : i32
    %28 = tpu.assume_multiple %27, 256 : i32
    %29 = arith.index_cast %28 : i32 to index
    %c0_18 = arith.constant 0 : index
    %30 = vector.load %arg1[%29, %c0_18] : memref<512x4xf32, #tpu.memory_space<vmem>>, vector<256x4xf32>
    %cst_19 = arith.constant dense<0.000000e+00> : vector<64x256xf32>
    %31 = tpu.matmul %0, %30, %cst_19 {dimension_numbers = #tpu.dot_dimension_numbers<[1], [1], [0], [0], [0, 0, 1, 0], [], []>} : vector<64x4xf32>, vector<256x4xf32>, vector<64x256xf32> -> vector<64x256xf32>
    %32 = vector.broadcast %1 : vector<64x1xf32> to vector<64x256xf32>
    %33 = arith.addf %31, %32 : vector<64x256xf32>
    %cst_20 = arith.constant 0.000000e+00 : f32
    %34 = vector.broadcast %cst_20 : f32 to vector<64x256xf32>
    %35 = arith.maximumf %33, %34 : vector<64x256xf32>
    %36 = arith.truncf %35 : vector<64x256xf32> to vector<64x256xbf16>
    %cst_21 = arith.constant dense<0.000000e+00> : vector<32x256xf32>
    %37 = tpu.matmul %2, %36, %cst_21 {dimension_numbers = #tpu.dot_dimension_numbers<[1], [0], [0], [1], [0, 0, 1, 1], [], []>} : vector<32x64xbf16>, vector<64x256xbf16>, vector<32x256xf32> -> vector<32x256xf32>
    %38 = vector.broadcast %3 : vector<32x1xf32> to vector<32x256xf32>
    %39 = arith.addf %37, %38 : vector<32x256xf32>
    %cst_22 = arith.constant 0.000000e+00 : f32
    %40 = vector.broadcast %cst_22 : f32 to vector<32x256xf32>
    %41 = arith.maximumf %39, %40 : vector<32x256xf32>
    %42 = arith.truncf %41 : vector<32x256xf32> to vector<32x256xbf16>
    %cst_23 = arith.constant dense<0.000000e+00> : vector<1x256xf32>
    %43 = tpu.matmul %4, %42, %cst_23 {dimension_numbers = #tpu.dot_dimension_numbers<[1], [0], [0], [1], [0, 0, 1, 1], [], []>} : vector<1x32xbf16>, vector<32x256xbf16>, vector<1x256xf32> -> vector<1x256xf32>
    %44 = vector.broadcast %5 : vector<1x1xf32> to vector<1x256xf32>
    %45 = arith.addf %43, %44 : vector<1x256xf32>
    %c0_24 = arith.constant 0 : index
    %46 = arith.index_cast %28 : i32 to index
    %47 = vector.load %arg8[%c0_24, %46] : memref<1x512xf32, #tpu.memory_space<vmem>>, vector<1x256xf32>
    tpu.vector_store %arg8[%c0_24, %46], %45 {strides = array<i32>} : memref<1x512xf32, #tpu.memory_space<vmem>>, vector<1x256xf32>,
    %c2_i32 = arith.constant 2 : i32
    return
  }
  func.func @transform_0(%arg0: i32) -> (i32, i32) {
    %c0_i32 = arith.constant 0 : i32
    %c0_i32_0 = arith.constant 0 : i32
    return %arg0, %c0_i32 : i32, i32
  }
  func.func @transform_1(%arg0: i32) -> (i32, i32) {
    %c0_i32 = arith.constant 0 : i32
    %c0_i32_0 = arith.constant 0 : i32
    %c0_i32_1 = arith.constant 0 : i32
    return %c0_i32, %c0_i32_0 : i32, i32
  }
  func.func @transform_2(%arg0: i32) -> (i32, i32) {
    %c0_i32 = arith.constant 0 : i32
    %c0_i32_0 = arith.constant 0 : i32
    %c0_i32_1 = arith.constant 0 : i32
    return %c0_i32, %c0_i32_0 : i32, i32
  }
  func.func @transform_3(%arg0: i32) -> (i32, i32) {
    %c0_i32 = arith.constant 0 : i32
    %c0_i32_0 = arith.constant 0 : i32
    %c0_i32_1 = arith.constant 0 : i32
    return %c0_i32, %c0_i32_0 : i32, i32
  }
  func.func @transform_4(%arg0: i32) -> (i32, i32) {
    %c0_i32 = arith.constant 0 : i32
    %c0_i32_0 = arith.constant 0 : i32
    %c0_i32_1 = arith.constant 0 : i32
    return %c0_i32, %c0_i32_0 : i32, i32
  }
  func.func @transform_5(%arg0: i32) -> (i32, i32) {
    %c0_i32 = arith.constant 0 : i32
    %c0_i32_0 = arith.constant 0 : i32
    %c0_i32_1 = arith.constant 0 : i32
    return %c0_i32, %c0_i32_0 : i32, i32
  }
  func.func @transform_6(%arg0: i32) -> (i32, i32) {
    %c0_i32 = arith.constant 0 : i32
    %c0_i32_0 = arith.constant 0 : i32
    %c0_i32_1 = arith.constant 0 : i32
    return %c0_i32, %c0_i32_0 : i32, i32
  }
  func.func @transform_7(%arg0: i32) -> (i32, i32) {
    %c0_i32 = arith.constant 0 : i32
    %c0_i32_0 = arith.constant 0 : i32
    return %c0_i32, %arg0 : i32, i32
  }
}

</mosaic_0001>

<llo_original>
// kernel: tpu_custom_call.1
$region0: #{tpu_custom_call.1}
  #allocation0 [shape = 'u32[]', space=smem, size = 0x4, offset = 0x4, fixed_abs, tag = 'smem constant byte address 0x4 - core index']
  #allocation1 [shape = 'u32[144,128]{1,0:T(1,128)}', space=vmem, size = 0x12000, scoped, tag = 'internal scratch']
  #allocation2 [shape = 'f32[1,1]{1,0:T(1,128)S(1)}', space=vmem, size = 0x200, scoped, tag = 'scoped memory for tpu_custom_call.1']
  %s0 = inlined_call_operand.vmem [shape: f32[1000,4], index: 0, kind: input, shape index: {}]
  %s1 = inlined_call_operand.vmem [shape: f32[64,4], index: 1, kind: input, shape index: {}]
  %s2 = inlined_call_operand.vmem [shape: f32[64,1], index: 2, kind: input, shape index: {}]
  %s3 = inlined_call_operand.vmem [shape: bf16[32,64], index: 3, kind: input, shape index: {}]
  %s4 = inlined_call_operand.vmem [shape: f32[32,1], index: 4, kind: input, shape index: {}]
  %s5 = inlined_call_operand.vmem [shape: bf16[1,32], index: 5, kind: input, shape index: {}]
  %s6 = inlined_call_operand.<no memory space> [shape: f32[1,1], index: 6, kind: input, shape index: {}]
  %s7 = inlined_call_operand.hbm [shape: f32[1,1000], index: 7, kind: output, shape index: {}]
  %s8 = sld [smem:[#allocation0]]
  $region61: #{tpu_custom_call.1} parent=0
    _
  %s10 = ssub.s32 1, %s8
  %s11 = scalar_select 0, %s10, %s8
  %v12 = vstv %s6
  %13 = vst [vmem:[#allocation2] sm:$0x1] %v12
  $region1: #{tpu_custom_call.1} parent=0
    #allocation3 [shape = 'u8[4096]{0}', space=vmem, size = 0x1000, scoped, tag = 'output window, operand 0']
    #allocation4 [shape = 's32[2]{0}', space=sflag, size = 0x8, scoped, tag = 'scoped memory for tpu_custom_call.1']
    %14 = vsyncpa [#allocation4], 0
    %s15 = scalar_lea.sflag [#allocation4], 1
    %16 = vsyncpa %s15, 0
    loop: start=0, step=1, limit=4
    $region2: #{tpu_custom_call.1} parent=1 // loop_pre_header
      _
    $region3: #{tpu_custom_call.1} parent=1 // loop_header
      %s18 = sphi 0, %s22
      %p19 = scmp.ge.s32.totalorder %s18, 4
      %s28 = sphi 0, %s30
      %s31 = sphi 0, %s28
      %s32 = sphi 0, %s31
      %s48 = sphi 0, %s32
      %s52 = sphi 0, %s52
      %s54 = sphi 0, %s52
      %s55 = sphi 0, %s54
      %s69 = sphi 0, %s55
      %s73 = sphi 0, %s73
      %s75 = sphi 0, %s73
      %s76 = sphi 0, %s75
      %s90 = sphi 0, %s76
      %s94 = sphi 0, %s94
      %s96 = sphi 0, %s94
      %s97 = sphi 0, %s96
      %s111 = sphi 0, %s97
      %s115 = sphi 0, %s115
      %s117 = sphi 0, %s115
      %s118 = sphi 0, %s117
      %s132 = sphi 0, %s118
      %s136 = sphi 0, %s136
      %s138 = sphi 0, %s136
      %s139 = sphi 0, %s138
      %s153 = sphi 0, %s139
      %s157 = sphi 0, %s157
      %s159 = sphi 0, %s157
      %s160 = sphi 0, %s159
      %s174 = sphi 0, %s160
      %s180 = sphi 0, %s182
      %s183 = sphi 0, %s180
      %s184 = sphi 0, %s183
      %s200 = sphi 0, %s184
    $region4: #{tpu_custom_call.1} parent=1 // loop_header_branch
      %21 = sbr.rel (%p19) target = $region8
    $region5: #{tpu_custom_call.1} parent=1 // loop_body
      %s23 = ssub.s32 %s18, 1
      %s24 = ssub.s32 %s18, 2
      %s25 = sadd.s32 %s18, 1
      %s26 = ssub.s32 %s18, %s25
      %p27 = scmp.eq.s32.totalorder %s26, 0
      %s29 = sadd.s32 %s28, 1
      %s30 = scalar_select %p27, %s28, %s29
      %p33 = pneg %p27
      %p34 = scmp.eq.s32.totalorder %s18, 1
      %p35 = por %p33, %p34
      %p36 = scmp.ne.s32.totalorder %s28, %s31
      %p37 = scmp.eq.s32.totalorder %s18, 0
      %p38 = por %p36, %p37
      %p39 = scmp.ne.s32.totalorder %s28, %s31
      %p40 = scmp.eq.s32.totalorder %s23, 1
      %p41 = por %p39, %p40
      %p42 = scmp.ne.s32.totalorder %s31, %s32
      %p43 = scmp.eq.s32.totalorder %s23, 0
      %p44 = por %p42, %p43
      %p45 = scmp.ne.s32.totalorder %s31, %s32
      %p46 = scmp.eq.s32.totalorder %s24, 1
      %p47 = por %p45, %p46
      %p49 = scmp.ne.s32.totalorder %s32, %s48
      %p50 = scmp.eq.s32.totalorder %s24, 0
      %p51 = por %p49, %p50
      %s53 = sadd.s32 %s52, 1
      %p56 = scmp.eq.s32.totalorder %s18, 1
      %p57 = scmp.ne.s32.totalorder %s52, %s54
      %p58 = scmp.eq.s32.totalorder %s18, 0
      %p59 = por %p57, %p58
      %p60 = scmp.ne.s32.totalorder %s52, %s54
      %p61 = scmp.eq.s32.totalorder %s23, 1
      %p62 = por %p60, %p61
      %p63 = scmp.ne.s32.totalorder %s54, %s55
      %p64 = scmp.eq.s32.totalorder %s23, 0
      %p65 = por %p63, %p64
      %p66 = scmp.ne.s32.totalorder %s54, %s55
      %p67 = scmp.eq.s32.totalorder %s24, 1
      %p68 = por %p66, %p67
      %p70 = scmp.ne.s32.totalorder %s55, %s69
      %p71 = scmp.eq.s32.totalorder %s24, 0
      %p72 = por %p70, %p71
      %s74 = sadd.s32 %s73, 1
      %p77 = scmp.eq.s32.totalorder %s18, 1
      %p78 = scmp.ne.s32.totalorder %s73, %s75
      %p79 = scmp.eq.s32.totalorder %s18, 0
      %p80 = por %p78, %p79
      %p81 = scmp.ne.s32.totalorder %s73, %s75
      %p82 = scmp.eq.s32.totalorder %s23, 1
      %p83 = por %p81, %p82
      %p84 = scmp.ne.s32.totalorder %s75, %s76
      %p85 = scmp.eq.s32.totalorder %s23, 0
      %p86 = por %p84, %p85
      %p87 = scmp.ne.s32.totalorder %s75, %s76
      %p88 = scmp.eq.s32.totalorder %s24, 1
      %p89 = por %p87, %p88
      %p91 = scmp.ne.s32.totalorder %s76, %s90
      %p92 = scmp.eq.s32.totalorder %s24, 0
      %p93 = por %p91, %p92
      %s95 = sadd.s32 %s94, 1
      %p98 = scmp.eq.s32.totalorder %s18, 1
      %p99 = scmp.ne.s32.totalorder %s94, %s96
      %p100 = scmp.eq.s32.totalorder %s18, 0
      %p101 = por %p99, %p100
      %p102 = scmp.ne.s32.totalorder %s94, %s96
      %p103 = scmp.eq.s32.totalorder %s23, 1
      %p104 = por %p102, %p103
      %p105 = scmp.ne.s32.totalorder %s96, %s97
      %p106 = scmp.eq.s32.totalorder %s23, 0
      %p107 = por %p105, %p106
      %p108 = scmp.ne.s32.totalorder %s96, %s97
      %p109 = scmp.eq.s32.totalorder %s24, 1
      %p110 = por %p108, %p109
      %p112 = scmp.ne.s32.totalorder %s97, %s111
      %p113 = scmp.eq.s32.totalorder %s24, 0
      %p114 = por %p112, %p113
      %s116 = sadd.s32 %s115, 1
      %p119 = scmp.eq.s32.totalorder %s18, 1
      %p120 = scmp.ne.s32.totalorder %s115, %s117
      %p121 = scmp.eq.s32.totalorder %s18, 0
      %p122 = por %p120, %p121
      %p123 = scmp.ne.s32.totalorder %s115, %s117
      %p124 = scmp.eq.s32.totalorder %s23, 1
      %p125 = por %p123, %p124
      %p126 = scmp.ne.s32.totalorder %s117, %s118
      %p127 = scmp.eq.s32.totalorder %s23, 0
      %p128 = por %p126, %p127
      %p129 = scmp.ne.s32.totalorder %s117, %s118
      %p130 = scmp.eq.s32.totalorder %s24, 1
      %p131 = por %p129, %p130
      %p133 = scmp.ne.s32.totalorder %s118, %s132
      %p134 = scmp.eq.s32.totalorder %s24, 0
      %p135 = por %p133, %p134
      %s137 = sadd.s32 %s136, 1
      %p140 = scmp.eq.s32.totalorder %s18, 1
      %p141 = scmp.ne.s32.totalorder %s136, %s138
      %p142 = scmp.eq.s32.totalorder %s18, 0
      %p143 = por %p141, %p142
      %p144 = scmp.ne.s32.totalorder %s136, %s138
      %p145 = scmp.eq.s32.totalorder %s23, 1
      %p146 = por %p144, %p145
      %p147 = scmp.ne.s32.totalorder %s138, %s139
      %p148 = scmp.eq.s32.totalorder %s23, 0
      %p149 = por %p147, %p148
      %p150 = scmp.ne.s32.totalorder %s138, %s139
      %p151 = scmp.eq.s32.totalorder %s24, 1
      %p152 = por %p150, %p151
      %p154 = scmp.ne.s32.totalorder %s139, %s153
      %p155 = scmp.eq.s32.totalorder %s24, 0
      %p156 = por %p154, %p155
      %s158 = sadd.s32 %s157, 1
      %p161 = scmp.eq.s32.totalorder %s18, 1
      %p162 = scmp.ne.s32.totalorder %s157, %s159
      %p163 = scmp.eq.s32.totalorder %s18, 0
      %p164 = por %p162, %p163
      %p165 = scmp.ne.s32.totalorder %s157, %s159
      %p166 = scmp.eq.s32.totalorder %s23, 1
      %p167 = por %p165, %p166
      %p168 = scmp.ne.s32.totalorder %s159, %s160
      %p169 = scmp.eq.s32.totalorder %s23, 0
      %p170 = por %p168, %p169
      %p171 = scmp.ne.s32.totalorder %s159, %s160
      %p172 = scmp.eq.s32.totalorder %s24, 1
      %p173 = por %p171, %p172
      %p175 = scmp.ne.s32.totalorder %s160, %s174
      %p176 = scmp.eq.s32.totalorder %s24, 0
      %p177 = por %p175, %p176
      %s178 = ssub.s32 %s18, %s25
      %p179 = scmp.eq.s32.totalorder %s178, 0
      %s181 = sadd.s32 %s180, 1
      %s182 = scalar_select %p179, %s180, %s181
      %p185 = pneg %p179
      %p186 = scmp.eq.s32.totalorder %s18, 1
      %p187 = por %p185, %p186
      %p188 = scmp.ne.s32.totalorder %s180, %s183
      %p189 = scmp.eq.s32.totalorder %s18, 0
      %p190 = por %p188, %p189
      %p191 = scmp.ne.s32.totalorder %s180, %s183
      %p192 = scmp.eq.s32.totalorder %s23, 1
      %p193 = por %p191, %p192
      %p194 = scmp.ne.s32.totalorder %s183, %s184
      %p195 = scmp.eq.s32.totalorder %s23, 0
      %p196 = por %p194, %p195
      %p197 = scmp.ne.s32.totalorder %s183, %s184
      %p198 = scmp.eq.s32.totalorder %s24, 1
      %p199 = por %p197, %p198
      %p201 = scmp.ne.s32.totalorder %s184, %s200
      %p202 = scmp.eq.s32.totalorder %s24, 0
      %p203 = por %p201, %p202
      %p204 = scmp.le.s32.totalorder 1, %s18
      %p205 = scmp.lt.s32.totalorder %s18, 3
      %p206 = pnand %p204, %p205
      %p207 = pneg %p206
      // Predicated region
      $region9: #{tpu_custom_call.1} parent=5 // pred_check
        _
      $region10: #{tpu_custom_call.1} parent=5 // pred_check_branch
        %209 = sbr.rel (%p206) target = $region12
      $region11: #{tpu_custom_call.1} parent=5 // pred_region
        %s210 = ssub.s32 %s18, 1
        // Predicated region
        $region13: #{tpu_custom_call.1} parent=11 // pred_check
          %p211 = pneg %p65
        $region14: #{tpu_custom_call.1} parent=11 // pred_check_branch
          %213 = sbr.rel (%p211) target = $region16
        $region15: #{tpu_custom_call.1} parent=11 // pred_region
          _
        $region16: #{tpu_custom_call.1} parent=11 // pred_fallthru
          _
        // Predicated region
        $region17: #{tpu_custom_call.1} parent=11 // pred_check
          %p214 = pneg %p86
        $region18: #{tpu_custom_call.1} parent=11 // pred_check_branch
          %216 = sbr.rel (%p214) target = $region20
        $region19: #{tpu_custom_call.1} parent=11 // pred_region
          _
        $region20: #{tpu_custom_call.1} parent=11 // pred_fallthru
          _
        // Predicated region
        $region21: #{tpu_custom_call.1} parent=11 // pred_check
          %p217 = pneg %p107
        $region22: #{tpu_custom_call.1} parent=11 // pred_check_branch
          %219 = sbr.rel (%p217) target = $region24
        $region23: #{tpu_custom_call.1} parent=11 // pred_region
          _
        $region24: #{tpu_custom_call.1} parent=11 // pred_fallthru
          _
        // Predicated region
        $region25: #{tpu_custom_call.1} parent=11 // pred_check
          %p220 = pneg %p128
        $region26: #{tpu_custom_call.1} parent=11 // pred_check_branch
          %222 = sbr.rel (%p220) target = $region28
        $region27: #{tpu_custom_call.1} parent=11 // pred_region
          _
        $region28: #{tpu_custom_call.1} parent=11 // pred_fallthru
          _
        // Predicated region
        $region29: #{tpu_custom_call.1} parent=11 // pred_check
          %p223 = pneg %p149
        $region30: #{tpu_custom_call.1} parent=11 // pred_check_branch
          %225 = sbr.rel (%p223) target = $region32
        $region31: #{tpu_custom_call.1} parent=11 // pred_region
          _
        $region32: #{tpu_custom_call.1} parent=11 // pred_fallthru
          _
        // Predicated region
        $region33: #{tpu_custom_call.1} parent=11 // pred_check
          %p226 = pneg %p170
        $region34: #{tpu_custom_call.1} parent=11 // pred_check_branch
          %228 = sbr.rel (%p226) target = $region36
        $region35: #{tpu_custom_call.1} parent=11 // pred_region
          _
        $region36: #{tpu_custom_call.1} parent=11 // pred_fallthru
          _
      $region12: #{tpu_custom_call.1} parent=5 // pred_fallthru
        _
      %p229 = scmp.lt.s32.totalorder %s18, 2
      // Predicated region
      $region37: #{tpu_custom_call.1} parent=5 // pred_check
        %p230 = pneg %p229
      $region38: #{tpu_custom_call.1} parent=5 // pred_check_branch
        %232 = sbr.rel (%p230) target = $region40
      $region39: #{tpu_custom_call.1} parent=5 // pred_region
        // Predicated region
        $region41: #{tpu_custom_call.1} parent=39 // pred_check
          %p233 = pneg %p38
        $region42: #{tpu_custom_call.1} parent=39 // pred_check_branch
          %235 = sbr.rel (%p233) target = $region44
        $region43: #{tpu_custom_call.1} parent=39 // pred_region
          %s236 = smul.u32 64, %s18
          %s237 = ssub.s32 125, %s236
          %p238 = scmp.lt.s32.totalorder %s237, 64
          %s239 = scalar_select %p238, %s237, 64
          %s240 = smul.u32 128, %s239
          %p241 = scmp.lt.s32.totalorder %s236, 124
          %s242 = scalar_select %p241, %s236, 124
          %s243 = smul.addr %s242, 8
          %s244 = scalar_lea.vmem %s0, %s243
          %s245 = smul.u32 64, %s18
          %s246 = ssub.s32 125, %s245
          %p247 = scmp.lt.s32.totalorder %s246, 64
          %s248 = scalar_select %p247, %s246, 64
          %s249 = smul.u32 128, %s248
        $region44: #{tpu_custom_call.1} parent=39 // pred_fallthru
          _
      $region40: #{tpu_custom_call.1} parent=5 // pred_fallthru
        _
      %p250 = scmp.le.s32.totalorder 1, %s18
      %p251 = scmp.lt.s32.totalorder %s18, 3
      %p252 = pnand %p250, %p251
      %p253 = pneg %p252
      // Predicated region
      $region45: #{tpu_custom_call.1} parent=5 // pred_check
        _
      $region46: #{tpu_custom_call.1} parent=5 // pred_check_branch
        %255 = sbr.rel (%p252) target = $region48
      $region47: #{tpu_custom_call.1} parent=5 // pred_region
        %s256 = ssub.s32 %s18, 1
        %s257 = smul.u32 64, %s23
        %s258 = ssub.s32 125, %s257
        %p259 = scmp.lt.s32.totalorder %s258, 64
        %s260 = scalar_select %p259, %s258, 64
        %s261 = smul.u32 128, %s260
        %p262 = scmp.lt.s32.totalorder %s257, 124
        %s263 = scalar_select %p262, %s257, 124
        %s264 = smul.addr %s263, 8
        %s265 = scalar_lea.vmem %s0, %s264
        %p266 = pneg %p44
        %p267 = pneg %p41
        %p268 = pneg %p65
        %p269 = pneg %p62
        %p270 = pneg %p86
        %p271 = pneg %p83
        %p272 = pneg %p107
        %p273 = pneg %p104
        %p274 = pneg %p128
        %p275 = pneg %p125
        %p276 = pneg %p149
        %p277 = pneg %p146
        %p278 = pneg %p170
        %p279 = pneg %p167
        %p280 = pneg %p196
        %p281 = pneg %p193
        %s282 = sand.u32 %s183, 1
        %s283 = scalar_lea.sflag [#allocation4], %s282
        %s284 = sand.u32 %s183, 1
        %s285 = smul.addr %s284, 4
        %s286 = scalar_lea.vmem [#allocation3], %s285
        %s287 = smul.u32 64, %s23
        %s288 = ssub.s32 125, %s287
        %p289 = scmp.lt.s32.totalorder %s288, 64
        %s290 = scalar_select %p289, %s288, 64
        %s291 = smul.u32 128, %s290
        %p292 = scmp.lt.s32.totalorder %s287, 124
        %s293 = scalar_select %p292, %s287, 124
        %s294 = smul.addr %s293, 8
        %s295 = scalar_lea.vmem %s0, %s294
        %s296 = smul.u32 64, %s23
        %s297 = ssub.s32 125, %s296
        %p298 = scmp.lt.s32.totalorder %s297, 64
        %s299 = scalar_select %p298, %s297, 64
        %s300 = smul.u32 128, %s299
        %s301 = smul.u32 4, %s23
        %v303 = vld [vmem:[%s1] sm:$0xff]
        %v304 = vld [vmem:[%s1 + $0x8] sm:$0xff]
        %v305 = vld [vmem:[%s1 + $0x10] sm:$0xff]
        %v306 = vld [vmem:[%s1 + $0x18] sm:$0xff]
        %v307 = vld [vmem:[%s1 + $0x20] sm:$0xff]
        %v308 = vld [vmem:[%s1 + $0x28] sm:$0xff]
        %v309 = vld [vmem:[%s1 + $0x30] sm:$0xff]
        %v310 = vld [vmem:[%s1 + $0x38] sm:$0xff]
        %v311 = vld [vmem:[%s2] sm:$0xff]
        %v312 = vld [vmem:[%s2 + $0x8] sm:$0xff]
        %v313 = vld [vmem:[%s2 + $0x10] sm:$0xff]
        %v314 = vld [vmem:[%s2 + $0x18] sm:$0xff]
        %v315 = vld [vmem:[%s2 + $0x20] sm:$0xff]
        %v316 = vld [vmem:[%s2 + $0x28] sm:$0xff]
        %v317 = vld [vmem:[%s2 + $0x30] sm:$0xff]
        %v318 = vld [vmem:[%s2 + $0x38] sm:$0xff]
        %v319 = vld [vmem:[%s3] sm:$0xf]
        %v320 = vld [vmem:[%s3 + $0x4] sm:$0xf]
        %v321 = vld [vmem:[%s3 + $0x8] sm:$0xf]
        %v322 = vld [vmem:[%s3 + $0xc] sm:$0xf]
        %v323 = vld [vmem:[%s4] sm:$0xff]
        %v324 = vld [vmem:[%s4 + $0x8] sm:$0xff]
        %v325 = vld [vmem:[%s4 + $0x10] sm:$0xff]
        %v326 = vld [vmem:[%s4 + $0x18] sm:$0xff]
        %v327 = vld [vmem:[%s5] sm:$0x1]
        %v328 = vld [vmem:[#allocation2] sm:$0x1]
        %v329 = vld [vmem:[%s295] sm:$0xff]
        %v330 = vld [vmem:[%s295 + $0x8] sm:$0xff]
        %v331 = vld [vmem:[%s295 + $0x10] sm:$0xff]
        %v332 = vld [vmem:[%s295 + $0x18] sm:$0xff]
        %v333 = vld [vmem:[%s295 + $0x20] sm:$0xff]
        %v334 = vld [vmem:[%s295 + $0x28] sm:$0xff]
        %v335 = vld [vmem:[%s295 + $0x30] sm:$0xff]
        %v336 = vld [vmem:[%s295 + $0x38] sm:$0xff]
        %v337 = vld [vmem:[%s295 + $0x40] sm:$0xff]
        %v338 = vld [vmem:[%s295 + $0x48] sm:$0xff]
        %v339 = vld [vmem:[%s295 + $0x50] sm:$0xff]
        %v340 = vld [vmem:[%s295 + $0x58] sm:$0xff]
        %v341 = vld [vmem:[%s295 + $0x60] sm:$0xff]
        %v342 = vld [vmem:[%s295 + $0x68] sm:$0xff]
        %v343 = vld [vmem:[%s295 + $0x70] sm:$0xff]
        %v344 = vld [vmem:[%s295 + $0x78] sm:$0xff]
        %v345 = vld [vmem:[%s295 + $0x80] sm:$0xff]
        %v346 = vld [vmem:[%s295 + $0x88] sm:$0xff]
        %v347 = vld [vmem:[%s295 + $0x90] sm:$0xff]
        %v348 = vld [vmem:[%s295 + $0x98] sm:$0xff]
        %v349 = vld [vmem:[%s295 + $0xa0] sm:$0xff]
        %v350 = vld [vmem:[%s295 + $0xa8] sm:$0xff]
        %v351 = vld [vmem:[%s295 + $0xb0] sm:$0xff]
        %v352 = vld [vmem:[%s295 + $0xb8] sm:$0xff]
        %v353 = vld [vmem:[%s295 + $0xc0] sm:$0xff]
        %v354 = vld [vmem:[%s295 + $0xc8] sm:$0xff]
        %v355 = vld [vmem:[%s295 + $0xd0] sm:$0xff]
        %v356 = vld [vmem:[%s295 + $0xd8] sm:$0xff]
        %v357 = vld [vmem:[%s295 + $0xe0] sm:$0xff]
        %v358 = vld [vmem:[%s295 + $0xe8] sm:$0xff]
        %v359 = vld [vmem:[%s295 + $0xf0] sm:$0xff]
        %v360 = vld [vmem:[%s295 + $0xf8] sm:$0xff]
        %362 = vset.pattern.permute.xlu0 0
        %363 = vperm.xlu0 %362, %v311
        %v364 = vpop.permute.xlu0 %363
        %367 = vset.pattern.permute.xlu0 0
        %368 = vperm.xlu0 %367, %v312
        %v369 = vpop.permute.xlu0 %368
        %372 = vset.pattern.permute.xlu0 0
        %373 = vperm.xlu0 %372, %v313
        %v374 = vpop.permute.xlu0 %373
        %377 = vset.pattern.permute.xlu0 0
        %378 = vperm.xlu0 %377, %v314
        %v379 = vpop.permute.xlu0 %378
        %382 = vset.pattern.permute.xlu0 0
        %383 = vperm.xlu0 %382, %v315
        %v384 = vpop.permute.xlu0 %383
        %387 = vset.pattern.permute.xlu0 0
        %388 = vperm.xlu0 %387, %v316
        %v389 = vpop.permute.xlu0 %388
        %392 = vset.pattern.permute.xlu0 0
        %393 = vperm.xlu0 %392, %v317
        %v394 = vpop.permute.xlu0 %393
        %397 = vset.pattern.permute.xlu0 0
        %398 = vperm.xlu0 %397, %v318
        %v399 = vpop.permute.xlu0 %398
        %vm401 = vcmask 31744
        %v403 = vsel %vm401, %v303, 0
        %v406 = vsel %vm401, %v304, 0
        %v409 = vsel %vm401, %v305, 0
        %v412 = vsel %vm401, %v306, 0
        %v415 = vsel %vm401, %v307, 0
        %v418 = vsel %vm401, %v308, 0
        %v421 = vsel %vm401, %v309, 0
        %v424 = vsel %vm401, %v310, 0
        %v427 = vsel %vm401, %v329, 0
        %v430 = vsel %vm401, %v330, 0
        %v433 = vsel %vm401, %v331, 0
        %v436 = vsel %vm401, %v332, 0
        %v439 = vsel %vm401, %v333, 0
        %v442 = vsel %vm401, %v334, 0
        %v445 = vsel %vm401, %v335, 0
        %v448 = vsel %vm401, %v336, 0
        %v451 = vsel %vm401, %v337, 0
        %v454 = vsel %vm401, %v338, 0
        %v457 = vsel %vm401, %v339, 0
        %v460 = vsel %vm401, %v340, 0
        %v463 = vsel %vm401, %v341, 0
        %v466 = vsel %vm401, %v342, 0
        %v469 = vsel %vm401, %v343, 0
        %v472 = vsel %vm401, %v344, 0
        %v475 = vsel %vm401, %v345, 0
        %v478 = vsel %vm401, %v346, 0
        %v481 = vsel %vm401, %v347, 0
        %v484 = vsel %vm401, %v348, 0
        %v487 = vsel %vm401, %v349, 0
        %v490 = vsel %vm401, %v350, 0
        %v493 = vsel %vm401, %v351, 0
        %v496 = vsel %vm401, %v352, 0
        %v499 = vsel %vm401, %v353, 0
        %v502 = vsel %vm401, %v354, 0
        %v505 = vsel %vm401, %v355, 0
        %v508 = vsel %vm401, %v356, 0
        %v511 = vsel %vm401, %v357, 0
        %v514 = vsel %vm401, %v358, 0
        %v517 = vsel %vm401, %v359, 0
        %v520 = vsel %vm401, %v360, 0
        %522 = vmatprep.subr.mxu0 0.0
        %523 = vmatpush1.xpose.msra.mxu0 %v427
        %524 = vmatprep.subr.mxu0 0.0
        %525 = vmatpush1.xpose.msra.mxu0 %v430
        %526 = vmatprep.subr.mxu0 0.0
        %527 = vmatpush1.xpose.msra.mxu0 %v433
        %528 = vmatprep.subr.mxu0 0.0
        %529 = vmatpush1.xpose.msra.mxu0 %v436
        %530 = vmatprep.subr.mxu0 0.0
        %531 = vmatpush1.xpose.msra.mxu0 %v439
        %532 = vmatprep.subr.mxu0 0.0
        %533 = vmatpush1.xpose.msra.mxu0 %v442
        %534 = vmatprep.subr.mxu0 0.0
        %535 = vmatpush1.xpose.msra.mxu0 %v445
        %536 = vmatprep.subr.mxu0 0.0
        %537 = vmatpush1.xpose.msra.mxu0 %v448
        %538 = vmatprep.subr.mxu0 0.0
        %539 = vmatpush1.xpose.msra.mxu0 %v451
        %540 = vmatprep.subr.mxu0 0.0
        %541 = vmatpush1.xpose.msra.mxu0 %v454
        %542 = vmatprep.subr.mxu0 0.0
        %543 = vmatpush1.xpose.msra.mxu0 %v457
        %544 = vmatprep.subr.mxu0 0.0
        %545 = vmatpush1.xpose.msra.mxu0 %v460
        %546 = vmatprep.subr.mxu0 0.0
        %547 = vmatpush1.xpose.msra.mxu0 %v463
        %548 = vmatprep.subr.mxu0 0.0
        %549 = vmatpush1.xpose.msra.mxu0 %v466
        %550 = vmatprep.subr.mxu0 0.0
        %551 = vmatpush1.xpose.msra.mxu0 %v469
        %552 = vmatprep.subr.mxu0 0.0
        %553 = vmatpush1.xpose.msra.mxu0 %v472
        %554 = vmatprep.subr.mxu0 0.0
        %555 = vmatpush1.xpose.msra.mxu0 %v475
        %556 = vmatprep.subr.mxu0 0.0
        %557 = vmatpush1.xpose.msra.mxu0 %v478
        %558 = vmatprep.subr.mxu0 0.0
        %559 = vmatpush1.xpose.msra.mxu0 %v481
        %560 = vmatprep.subr.mxu0 0.0
        %561 = vmatpush1.xpose.msra.mxu0 %v484
        %562 = vmatprep.subr.mxu0 0.0
        %563 = vmatpush1.xpose.msra.mxu0 %v487
        %564 = vmatprep.subr.mxu0 0.0
        %565 = vmatpush1.xpose.msra.mxu0 %v490
        %566 = vmatprep.subr.mxu0 0.0
        %567 = vmatpush1.xpose.msra.mxu0 %v493
        %568 = vmatprep.subr.mxu0 0.0
        %569 = vmatpush1.xpose.msra.mxu0 %v496
        %570 = vmatprep.subr.mxu0 0.0
        %571 = vmatpush1.xpose.msra.mxu0 %v499
        %572 = vmatprep.subr.mxu0 0.0
        %573 = vmatpush1.xpose.msra.mxu0 %v502
        %574 = vmatprep.subr.mxu0 0.0
        %575 = vmatpush1.xpose.msra.mxu0 %v505
        %576 = vmatprep.subr.mxu0 0.0
        %577 = vmatpush1.xpose.msra.mxu0 %v508
        %578 = vmatprep.subr.mxu0 0.0
        %579 = vmatpush1.xpose.msra.mxu0 %v511
        %580 = vmatprep.subr.mxu0 0.0
        %581 = vmatpush1.xpose.msra.mxu0 %v514
        %582 = vmatprep.subr.mxu0 0.0
        %583 = vmatpush1.xpose.msra.mxu0 %v517
        %584 = vmatprep.subr.mxu0 0.0
        %585 = vmatpush1.xpose.msra.mxu0 %v520
        %586 = vmatprep.mubr.f32.mxu0 0.0
        %587 = vmatmul.mubr.f32.gmra.mrb[0].mxu0 %v403
        %v588 = vpop.f32.mrb[0].mxu0
        %v589 = vadd.f32 %v364, %v588
        %v590 = vpop.f32.mrb[0].mxu0
        %v591 = vadd.f32 %v364, %v590
        %592 = vmatprep.mubr.f32.mxu0 0.0
        %593 = vmatmul.mubr.f32.gmra.mrb[0].mxu0 %v406
        %v594 = vpop.f32.mrb[0].mxu0
        %v595 = vadd.f32 %v369, %v594
        %v596 = vpop.f32.mrb[0].mxu0
        %v597 = vadd.f32 %v369, %v596
        %598 = vmatprep.mubr.f32.mxu0 0.0
        %599 = vmatmul.mubr.f32.gmra.mrb[0].mxu0 %v409
        %v600 = vpop.f32.mrb[0].mxu0
        %v601 = vadd.f32 %v374, %v600
        %v602 = vpop.f32.mrb[0].mxu0
        %v603 = vadd.f32 %v374, %v602
        %604 = vmatprep.mubr.f32.mxu0 0.0
        %605 = vmatmul.mubr.f32.gmra.mrb[0].mxu0 %v412
        %v606 = vpop.f32.mrb[0].mxu0
        %v607 = vadd.f32 %v379, %v606
        %v608 = vpop.f32.mrb[0].mxu0
        %v609 = vadd.f32 %v379, %v608
        %610 = vmatprep.mubr.f32.mxu0 0.0
        %611 = vmatmul.mubr.f32.gmra.mrb[0].mxu0 %v415
        %v612 = vpop.f32.mrb[0].mxu0
        %v613 = vadd.f32 %v384, %v612
        %v614 = vpop.f32.mrb[0].mxu0
        %v615 = vadd.f32 %v384, %v614
        %616 = vmatprep.mubr.f32.mxu0 0.0
        %617 = vmatmul.mubr.f32.gmra.mrb[0].mxu0 %v418
        %v618 = vpop.f32.mrb[0].mxu0
        %v619 = vadd.f32 %v389, %v618
        %v620 = vpop.f32.mrb[0].mxu0
        %v621 = vadd.f32 %v389, %v620
        %622 = vmatprep.mubr.f32.mxu0 0.0
        %623 = vmatmul.mubr.f32.gmra.mrb[0].mxu0 %v421
        %v624 = vpop.f32.mrb[0].mxu0
        %v625 = vadd.f32 %v394, %v624
        %v626 = vpop.f32.mrb[0].mxu0
        %v627 = vadd.f32 %v394, %v626
        %628 = vmatprep.mubr.f32.mxu0 0.0
        %629 = vmatmul.mubr.f32.gmra.mrb[0].mxu0 %v424
        %v630 = vpop.f32.mrb[0].mxu0
        %v631 = vadd.f32 %v399, %v630
        %v632 = vpop.f32.mrb[0].mxu0
        %v633 = vadd.f32 %v399, %v632
        %634 = vdwg.mxu0
        %v635 = vmax.f32 %v589, 0.0
        %v636 = vmax.f32 %v591, 0.0
        %v637 = vmax.f32 %v595, 0.0
        %v638 = vmax.f32 %v597, 0.0
        %v639 = vmax.f32 %v601, 0.0
        %v640 = vmax.f32 %v603, 0.0
        %v641 = vmax.f32 %v607, 0.0
        %v642 = vmax.f32 %v609, 0.0
        %v643 = vmax.f32 %v613, 0.0
        %v644 = vmax.f32 %v615, 0.0
        %v645 = vmax.f32 %v619, 0.0
        %v646 = vmax.f32 %v621, 0.0
        %v647 = vmax.f32 %v625, 0.0
        %v648 = vmax.f32 %v627, 0.0
        %v649 = vmax.f32 %v631, 0.0
        %v650 = vmax.f32 %v633, 0.0
        %v651 = vpack.c.bf16 %v637, %v635
        %v652 = vpack.c.bf16 %v638, %v636
        %v653 = vpack.c.bf16 %v641, %v639
        %v654 = vpack.c.bf16 %v642, %v640
        %v655 = vpack.c.bf16 %v645, %v643
        %v656 = vpack.c.bf16 %v646, %v644
        %v657 = vpack.c.bf16 %v649, %v647
        %v658 = vpack.c.bf16 %v650, %v648
        %660 = vset.pattern.permute.xlu0 0
        %661 = vperm.xlu0 %660, %v323
        %v662 = vpop.permute.xlu0 %661
        %665 = vset.pattern.permute.xlu0 0
        %666 = vperm.xlu0 %665, %v324
        %v667 = vpop.permute.xlu0 %666
        %670 = vset.pattern.permute.xlu0 0
        %671 = vperm.xlu0 %670, %v325
        %v672 = vpop.permute.xlu0 %671
        %675 = vset.pattern.permute.xlu0 0
        %676 = vperm.xlu0 %675, %v326
        %v677 = vpop.permute.xlu0 %676
        %v683 = vunpack.c.l.b16 %v319
        %v684 = vunpack.c.l.b16 %v320
        %v685 = vunpack.c.l.b16 %v321
        %v686 = vunpack.c.l.b16 %v322
        %v687 = vpack.c.b16 %v684, %v683
        %v688 = vpack.c.b16 %v686, %v685
        %vm689 = vcmask 523264
        %v691 = vsel %vm689, %v687, 0
        %v694 = vsel %vm689, %v688, 0
        %696 = vmatprep.subr.bf16.mxu0 %v652
        %697 = vmatpush1.bf16.msra.mxu0 %v651
        %698 = vmatprep.subr.bf16.mxu0 %v654
        %699 = vmatpush1.bf16.msra.mxu0 %v653
        %700 = vmatprep.subr.bf16.mxu0 %v656
        %701 = vmatpush1.bf16.msra.mxu0 %v655
        %702 = vmatprep.subr.bf16.mxu0 %v658
        %703 = vmatpush1.bf16.msra.mxu0 %v657
        %704 = vmatprep.subr.bf16.mxu0 0
        %705 = vmatpush1.bf16.msra.mxu0 0
        %706 = vmatprep.subr.bf16.mxu0 0
        %707 = vmatpush1.bf16.msra.mxu0 0
        %708 = vmatprep.subr.bf16.mxu0 0
        %709 = vmatpush1.bf16.msra.mxu0 0
        %710 = vmatprep.subr.bf16.mxu0 0
        %711 = vmatpush1.bf16.msra.mxu0 0
        %712 = vmatprep.subr.bf16.mxu0 0
        %713 = vmatpush1.bf16.msra.mxu0 0
        %714 = vmatprep.subr.bf16.mxu0 0
        %715 = vmatpush1.bf16.msra.mxu0 0
        %716 = vmatprep.subr.bf16.mxu0 0
        %717 = vmatpush1.bf16.msra.mxu0 0
        %718 = vmatprep.subr.bf16.mxu0 0
        %719 = vmatpush1.bf16.msra.mxu0 0
        %720 = vmatprep.subr.bf16.mxu0 0
        %721 = vmatpush1.bf16.msra.mxu0 0
        %722 = vmatprep.subr.bf16.mxu0 0
        %723 = vmatpush1.bf16.msra.mxu0 0
        %724 = vmatprep.subr.bf16.mxu0 0
        %725 = vmatpush1.bf16.msra.mxu0 0
        %726 = vmatprep.subr.bf16.mxu0 0
        %727 = vmatpush1.bf16.msra.mxu0 0
        %728 = vmatprep.mubr.bf16.mxu0 0
        %729 = vmatmul.mubr.bf16.gmra.mrb[0].mxu0 %v691
        %v730 = vpop.f32.mrb[0].mxu0
        %v731 = vadd.f32 %v662, %v730
        %v732 = vpop.f32.mrb[0].mxu0
        %v733 = vadd.f32 %v662, %v732
        %v734 = vpop.f32.mrb[0].mxu0
        %v735 = vadd.f32 %v667, %v734
        %v736 = vpop.f32.mrb[0].mxu0
        %v737 = vadd.f32 %v667, %v736
        %738 = vmatprep.mubr.bf16.mxu0 0
        %739 = vmatmul.mubr.bf16.gmra.mrb[0].mxu0 %v694
        %v740 = vpop.f32.mrb[0].mxu0
        %v741 = vadd.f32 %v672, %v740
        %v742 = vpop.f32.mrb[0].mxu0
        %v743 = vadd.f32 %v672, %v742
        %v744 = vpop.f32.mrb[0].mxu0
        %v745 = vadd.f32 %v677, %v744
        %v746 = vpop.f32.mrb[0].mxu0
        %v747 = vadd.f32 %v677, %v746
        %748 = vdwg.mxu0
        %v749 = vmax.f32 %v731, 0.0
        %v750 = vmax.f32 %v733, 0.0
        %v751 = vmax.f32 %v735, 0.0
        %v752 = vmax.f32 %v737, 0.0
        %v753 = vmax.f32 %v741, 0.0
        %v754 = vmax.f32 %v743, 0.0
        %v755 = vmax.f32 %v745, 0.0
        %v756 = vmax.f32 %v747, 0.0
        %v757 = vpack.c.bf16 %v751, %v749
        %v758 = vpack.c.bf16 %v752, %v750
        %v759 = vpack.c.bf16 %v755, %v753
        %v760 = vpack.c.bf16 %v756, %v754
        %762 = vset.pattern.permute.xlu0 0
        %763 = vperm.xlu0 %762, %v328
        %v764 = vpop.permute.xlu0 %763
        %v766 = vlaneseq
        %v767 = vshrl.u32 %v766, 7
        %v768 = vsub.s32 0, %v767
        %v769 = vrot.slane %v764, %v768
        %vm770 = vcmask 261120
        %v772 = vsel %vm770, %v327, 0
        %774 = vmatprep.subr.bf16.mxu0 %v758
        %775 = vmatpush1.bf16.msra.mxu0 %v757
        %776 = vmatprep.subr.bf16.mxu0 %v760
        %777 = vmatpush1.bf16.msra.mxu0 %v759
        %778 = vmatprep.subr.bf16.mxu0 0
        %779 = vmatpush1.bf16.msra.mxu0 0
        %780 = vmatprep.subr.bf16.mxu0 0
        %781 = vmatpush1.bf16.msra.mxu0 0
        %782 = vmatprep.subr.bf16.mxu0 0
        %783 = vmatpush1.bf16.msra.mxu0 0
        %784 = vmatprep.subr.bf16.mxu0 0
        %785 = vmatpush1.bf16.msra.mxu0 0
        %786 = vmatprep.subr.bf16.mxu0 0
        %787 = vmatpush1.bf16.msra.mxu0 0
        %788 = vmatprep.subr.bf16.mxu0 0
        %789 = vmatpush1.bf16.msra.mxu0 0
        %790 = vmatprep.subr.bf16.mxu0 0
        %791 = vmatpush1.bf16.msra.mxu0 0
        %792 = vmatprep.subr.bf16.mxu0 0
        %793 = vmatpush1.bf16.msra.mxu0 0
        %794 = vmatprep.subr.bf16.mxu0 0
        %795 = vmatpush1.bf16.msra.mxu0 0
        %796 = vmatprep.subr.bf16.mxu0 0
        %797 = vmatpush1.bf16.msra.mxu0 0
        %798 = vmatprep.subr.bf16.mxu0 0
        %799 = vmatpush1.bf16.msra.mxu0 0
        %800 = vmatprep.subr.bf16.mxu0 0
        %801 = vmatpush1.bf16.msra.mxu0 0
        %802 = vmatprep.subr.bf16.mxu0 0
        %803 = vmatpush1.bf16.msra.mxu0 0
        %804 = vmatprep.subr.bf16.mxu0 0
        %805 = vmatpush1.bf16.msra.mxu0 0
        %806 = vmatprep.mubr.bf16.mxu0 0
        %807 = vmatmul.mubr.bf16.gmra.mrb[0].mxu0 %v772
        %v808 = vpop.f32.mrb[0].mxu0
        %v809 = vadd.f32 %v769, %v808
        %v810 = vpop.f32.mrb[0].mxu0
        %v811 = vadd.f32 %v769, %v810
        %v812 = vpop.f32.mrb[0].mxu0
        %v813 = vpop.f32.mrb[0].mxu0
        %814 = vdwg.mxu0
        %v817 = vcombine.low %v809, %v811
        %v819 = vunpack.c.l.s4 1966171168
        %v820 = vunpack.c.0.s8 %v819
        %v821 = vlaneseq
        %v822 = vshrl.u32 %v821, 7
        %v823 = vsub.s32 %v820, %v822
        %v824 = vrot.slane %v817, %v823
        %v826 = vunpack.c.l.s4 1966171168
        %v827 = vunpack.c.0.s8 %v826
        %v828 = vlaneseq
        %v829 = vshrl.u32 %v828, 7
        %v830 = vsub.s32 %v827, %v829
        %v831 = vrot.slane %v824, %v830
        %v833 = vlaneseq
        %vm834 = vcmp.ge.s32.totalorder %v833, 0
        %vm835 = vcmp.lt.s32.totalorder %v833, 256
        %vm836 = vmand %vm834, %vm835
        %837 = vst.msk [vmem:[%s286] sm:$0x3] %vm836, %v831
        %s838 = scalar_lea.vmem %s295, 256
        %v839 = vld [vmem:[%s838] sm:$0xff]
        %v840 = vld [vmem:[%s838 + $0x8] sm:$0xff]
        %v841 = vld [vmem:[%s838 + $0x10] sm:$0xff]
        %v842 = vld [vmem:[%s838 + $0x18] sm:$0xff]
        %v843 = vld [vmem:[%s838 + $0x20] sm:$0xff]
        %v844 = vld [vmem:[%s838 + $0x28] sm:$0xff]
        %v845 = vld [vmem:[%s838 + $0x30] sm:$0xff]
        %v846 = vld [vmem:[%s838 + $0x38] sm:$0xff]
        %v847 = vld [vmem:[%s838 + $0x40] sm:$0xff]
        %v848 = vld [vmem:[%s838 + $0x48] sm:$0xff]
        %v849 = vld [vmem:[%s838 + $0x50] sm:$0xff]
        %v850 = vld [vmem:[%s838 + $0x58] sm:$0xff]
        %v851 = vld [vmem:[%s838 + $0x60] sm:$0xff]
        %v852 = vld [vmem:[%s838 + $0x68] sm:$0xff]
        %v853 = vld [vmem:[%s838 + $0x70] sm:$0xff]
        %v854 = vld [vmem:[%s838 + $0x78] sm:$0xff]
        %v855 = vld [vmem:[%s838 + $0x80] sm:$0xff]
        %v856 = vld [vmem:[%s838 + $0x88] sm:$0xff]
        %v857 = vld [vmem:[%s838 + $0x90] sm:$0xff]
        %v858 = vld [vmem:[%s838 + $0x98] sm:$0xff]
        %v859 = vld [vmem:[%s838 + $0xa0] sm:$0xff]
        %v860 = vld [vmem:[%s838 + $0xa8] sm:$0xff]
        %v861 = vld [vmem:[%s838 + $0xb0] sm:$0xff]
        %v862 = vld [vmem:[%s838 + $0xb8] sm:$0xff]
        %v863 = vld [vmem:[%s838 + $0xc0] sm:$0xff]
        %v864 = vld [vmem:[%s838 + $0xc8] sm:$0xff]
        %v865 = vld [vmem:[%s838 + $0xd0] sm:$0xff]
        %v866 = vld [vmem:[%s838 + $0xd8] sm:$0xff]
        %v867 = vld [vmem:[%s838 + $0xe0] sm:$0xff]
        %v868 = vld [vmem:[%s838 + $0xe8] sm:$0xff]
        %v869 = vld [vmem:[%s838 + $0xf0] sm:$0xff]
        %v870 = vld [vmem:[%s838 + $0xf8] sm:$0xff]
        %v872 = vsel %vm401, %v839, 0
        %v875 = vsel %vm401, %v840, 0
        %v878 = vsel %vm401, %v841, 0
        %v881 = vsel %vm401, %v842, 0
        %v884 = vsel %vm401, %v843, 0
        %v887 = vsel %vm401, %v844, 0
        %v890 = vsel %vm401, %v845, 0
        %v893 = vsel %vm401, %v846, 0
        %v896 = vsel %vm401, %v847, 0
        %v899 = vsel %vm401, %v848, 0
        %v902 = vsel %vm401, %v849, 0
        %v905 = vsel %vm401, %v850, 0
        %v908 = vsel %vm401, %v851, 0
        %v911 = vsel %vm401, %v852, 0
        %v914 = vsel %vm401, %v853, 0
        %v917 = vsel %vm401, %v854, 0
        %v920 = vsel %vm401, %v855, 0
        %v923 = vsel %vm401, %v856, 0
        %v926 = vsel %vm401, %v857, 0
        %v929 = vsel %vm401, %v858, 0
        %v932 = vsel %vm401, %v859, 0
        %v935 = vsel %vm401, %v860, 0
        %v938 = vsel %vm401, %v861, 0
        %v941 = vsel %vm401, %v862, 0
        %v944 = vsel %vm401, %v863, 0
        %v947 = vsel %vm401, %v864, 0
        %v950 = vsel %vm401, %v865, 0
        %v953 = vsel %vm401, %v866, 0
        %v956 = vsel %vm401, %v867, 0
        %v959 = vsel %vm401, %v868, 0
        %v962 = vsel %vm401, %v869, 0
        %v965 = vsel %vm401, %v870, 0
        %967 = vmatprep.subr.mxu0 0.0
        %968 = vmatpush1.xpose.msra.mxu0 %v872
        %969 = vmatprep.subr.mxu0 0.0
        %970 = vmatpush1.xpose.msra.mxu0 %v875
        %971 = vmatprep.subr.mxu0 0.0
        %972 = vmatpush1.xpose.msra.mxu0 %v878
        %973 = vmatprep.subr.mxu0 0.0
        %974 = vmatpush1.xpose.msra.mxu0 %v881
        %975 = vmatprep.subr.mxu0 0.0
        %976 = vmatpush1.xpose.msra.mxu0 %v884
        %977 = vmatprep.subr.mxu0 0.0
        %978 = vmatpush1.xpose.msra.mxu0 %v887
        %979 = vmatprep.subr.mxu0 0.0
        %980 = vmatpush1.xpose.msra.mxu0 %v890
        %981 = vmatprep.subr.mxu0 0.0
        %982 = vmatpush1.xpose.msra.mxu0 %v893
        %983 = vmatprep.subr.mxu0 0.0
        %984 = vmatpush1.xpose.msra.mxu0 %v896
        %985 = vmatprep.subr.mxu0 0.0
        %986 = vmatpush1.xpose.msra.mxu0 %v899
        %987 = vmatprep.subr.mxu0 0.0
        %988 = vmatpush1.xpose.msra.mxu0 %v902
        %989 = vmatprep.subr.mxu0 0.0
        %990 = vmatpush1.xpose.msra.mxu0 %v905
        %991 = vmatprep.subr.mxu0 0.0
        %992 = vmatpush1.xpose.msra.mxu0 %v908
        %993 = vmatprep.subr.mxu0 0.0
        %994 = vmatpush1.xpose.msra.mxu0 %v911
        %995 = vmatprep.subr.mxu0 0.0
        %996 = vmatpush1.xpose.msra.mxu0 %v914
        %997 = vmatprep.subr.mxu0 0.0
        %998 = vmatpush1.xpose.msra.mxu0 %v917
        %999 = vmatprep.subr.mxu0 0.0
        %1000 = vmatpush1.xpose.msra.mxu0 %v920
        %1001 = vmatprep.subr.mxu0 0.0
        %1002 = vmatpush1.xpose.msra.mxu0 %v923
        %1003 = vmatprep.subr.mxu0 0.0
        %1004 = vmatpush1.xpose.msra.mxu0 %v926
        %1005 = vmatprep.subr.mxu0 0.0
        %1006 = vmatpush1.xpose.msra.mxu0 %v929
        %1007 = vmatprep.subr.mxu0 0.0
        %1008 = vmatpush1.xpose.msra.mxu0 %v932
        %1009 = vmatprep.subr.mxu0 0.0
        %1010 = vmatpush1.xpose.msra.mxu0 %v935
        %1011 = vmatprep.subr.mxu0 0.0
        %1012 = vmatpush1.xpose.msra.mxu0 %v938
        %1013 = vmatprep.subr.mxu0 0.0
        %1014 = vmatpush1.xpose.msra.mxu0 %v941
        %1015 = vmatprep.subr.mxu0 0.0
        %1016 = vmatpush1.xpose.msra.mxu0 %v944
        %1017 = vmatprep.subr.mxu0 0.0
        %1018 = vmatpush1.xpose.msra.mxu0 %v947
        %1019 = vmatprep.subr.mxu0 0.0
        %1020 = vmatpush1.xpose.msra.mxu0 %v950
        %1021 = vmatprep.subr.mxu0 0.0
        %1022 = vmatpush1.xpose.msra.mxu0 %v953
        %1023 = vmatprep.subr.mxu0 0.0
        %1024 = vmatpush1.xpose.msra.mxu0 %v956
        %1025 = vmatprep.subr.mxu0 0.0
        %1026 = vmatpush1.xpose.msra.mxu0 %v959
        %1027 = vmatprep.subr.mxu0 0.0
        %1028 = vmatpush1.xpose.msra.mxu0 %v962
        %1029 = vmatprep.subr.mxu0 0.0
        %1030 = vmatpush1.xpose.msra.mxu0 %v965
        %1031 = vmatprep.mubr.f32.mxu0 0.0
        %1032 = vmatmul.mubr.f32.gmra.mrb[0].mxu0 %v403
        %v1033 = vpop.f32.mrb[0].mxu0
        %v1034 = vadd.f32 %v364, %v1033
        %v1035 = vpop.f32.mrb[0].mxu0
        %v1036 = vadd.f32 %v364, %v1035
        %1037 = vmatprep.mubr.f32.mxu0 0.0
        %1038 = vmatmul.mubr.f32.gmra.mrb[0].mxu0 %v406
        %v1039 = vpop.f32.mrb[0].mxu0
        %v1040 = vadd.f32 %v369, %v1039
        %v1041 = vpop.f32.mrb[0].mxu0
        %v1042 = vadd.f32 %v369, %v1041
        %1043 = vmatprep.mubr.f32.mxu0 0.0
        %1044 = vmatmul.mubr.f32.gmra.mrb[0].mxu0 %v409
        %v1045 = vpop.f32.mrb[0].mxu0
        %v1046 = vadd.f32 %v374, %v1045
        %v1047 = vpop.f32.mrb[0].mxu0
        %v1048 = vadd.f32 %v374, %v1047
        %1049 = vmatprep.mubr.f32.mxu0 0.0
        %1050 = vmatmul.mubr.f32.gmra.mrb[0].mxu0 %v412
        %v1051 = vpop.f32.mrb[0].mxu0
        %v1052 = vadd.f32 %v379, %v1051
        %v1053 = vpop.f32.mrb[0].mxu0
        %v1054 = vadd.f32 %v379, %v1053
        %1055 = vmatprep.mubr.f32.mxu0 0.0
        %1056 = vmatmul.mubr.f32.gmra.mrb[0].mxu0 %v415
        %v1057 = vpop.f32.mrb[0].mxu0
        %v1058 = vadd.f32 %v384, %v1057
        %v1059 = vpop.f32.mrb[0].mxu0
        %v1060 = vadd.f32 %v384, %v1059
        %1061 = vmatprep.mubr.f32.mxu0 0.0
        %1062 = vmatmul.mubr.f32.gmra.mrb[0].mxu0 %v418
        %v1063 = vpop.f32.mrb[0].mxu0
        %v1064 = vadd.f32 %v389, %v1063
        %v1065 = vpop.f32.mrb[0].mxu0
        %v1066 = vadd.f32 %v389, %v1065
        %1067 = vmatprep.mubr.f32.mxu0 0.0
        %1068 = vmatmul.mubr.f32.gmra.mrb[0].mxu0 %v421
        %v1069 = vpop.f32.mrb[0].mxu0
        %v1070 = vadd.f32 %v394, %v1069
        %v1071 = vpop.f32.mrb[0].mxu0
        %v1072 = vadd.f32 %v394, %v1071
        %1073 = vmatprep.mubr.f32.mxu0 0.0
        %1074 = vmatmul.mubr.f32.gmra.mrb[0].mxu0 %v424
        %v1075 = vpop.f32.mrb[0].mxu0
        %v1076 = vadd.f32 %v399, %v1075
        %v1077 = vpop.f32.mrb[0].mxu0
        %v1078 = vadd.f32 %v399, %v1077
        %1079 = vdwg.mxu0
        %v1080 = vmax.f32 %v1034, 0.0
        %v1081 = vmax.f32 %v1036, 0.0
        %v1082 = vmax.f32 %v1040, 0.0
        %v1083 = vmax.f32 %v1042, 0.0
        %v1084 = vmax.f32 %v1046, 0.0
        %v1085 = vmax.f32 %v1048, 0.0
        %v1086 = vmax.f32 %v1052, 0.0
        %v1087 = vmax.f32 %v1054, 0.0
        %v1088 = vmax.f32 %v1058, 0.0
        %v1089 = vmax.f32 %v1060, 0.0
        %v1090 = vmax.f32 %v1064, 0.0
        %v1091 = vmax.f32 %v1066, 0.0
        %v1092 = vmax.f32 %v1070, 0.0
        %v1093 = vmax.f32 %v1072, 0.0
        %v1094 = vmax.f32 %v1076, 0.0
        %v1095 = vmax.f32 %v1078, 0.0
        %v1096 = vpack.c.bf16 %v1082, %v1080
        %v1097 = vpack.c.bf16 %v1083, %v1081
        %v1098 = vpack.c.bf16 %v1086, %v1084
        %v1099 = vpack.c.bf16 %v1087, %v1085
        %v1100 = vpack.c.bf16 %v1090, %v1088
        %v1101 = vpack.c.bf16 %v1091, %v1089
        %v1102 = vpack.c.bf16 %v1094, %v1092
        %v1103 = vpack.c.bf16 %v1095, %v1093
        %1104 = vmatprep.subr.bf16.mxu0 %v1097
        %1105 = vmatpush1.bf16.msra.mxu0 %v1096
        %1106 = vmatprep.subr.bf16.mxu0 %v1099
        %1107 = vmatpush1.bf16.msra.mxu0 %v1098
        %1108 = vmatprep.subr.bf16.mxu0 %v1101
        %1109 = vmatpush1.bf16.msra.mxu0 %v1100
        %1110 = vmatprep.subr.bf16.mxu0 %v1103
        %1111 = vmatpush1.bf16.msra.mxu0 %v1102
        %1112 = vmatprep.subr.bf16.mxu0 0
        %1113 = vmatpush1.bf16.msra.mxu0 0
        %1114 = vmatprep.subr.bf16.mxu0 0
        %1115 = vmatpush1.bf16.msra.mxu0 0
        %1116 = vmatprep.subr.bf16.mxu0 0
        %1117 = vmatpush1.bf16.msra.mxu0 0
        %1118 = vmatprep.subr.bf16.mxu0 0
        %1119 = vmatpush1.bf16.msra.mxu0 0
        %1120 = vmatprep.subr.bf16.mxu0 0
        %1121 = vmatpush1.bf16.msra.mxu0 0
        %1122 = vmatprep.subr.bf16.mxu0 0
        %1123 = vmatpush1.bf16.msra.mxu0 0
        %1124 = vmatprep.subr.bf16.mxu0 0
        %1125 = vmatpush1.bf16.msra.mxu0 0
        %1126 = vmatprep.subr.bf16.mxu0 0
        %1127 = vmatpush1.bf16.msra.mxu0 0
        %1128 = vmatprep.subr.bf16.mxu0 0
        %1129 = vmatpush1.bf16.msra.mxu0 0
        %1130 = vmatprep.subr.bf16.mxu0 0
        %1131 = vmatpush1.bf16.msra.mxu0 0
        %1132 = vmatprep.subr.bf16.mxu0 0
        %1133 = vmatpush1.bf16.msra.mxu0 0
        %1134 = vmatprep.subr.bf16.mxu0 0
        %1135 = vmatpush1.bf16.msra.mxu0 0
        %1136 = vmatprep.mubr.bf16.mxu0 0
        %1137 = vmatmul.mubr.bf16.gmra.mrb[0].mxu0 %v691
        %v1138 = vpop.f32.mrb[0].mxu0
        %v1139 = vadd.f32 %v662, %v1138
        %v1140 = vpop.f32.mrb[0].mxu0
        %v1141 = vadd.f32 %v662, %v1140
        %v1142 = vpop.f32.mrb[0].mxu0
        %v1143 = vadd.f32 %v667, %v1142
        %v1144 = vpop.f32.mrb[0].mxu0
        %v1145 = vadd.f32 %v667, %v1144
        %1146 = vmatprep.mubr.bf16.mxu0 0
        %1147 = vmatmul.mubr.bf16.gmra.mrb[0].mxu0 %v694
        %v1148 = vpop.f32.mrb[0].mxu0
        %v1149 = vadd.f32 %v672, %v1148
        %v1150 = vpop.f32.mrb[0].mxu0
        %v1151 = vadd.f32 %v672, %v1150
        %v1152 = vpop.f32.mrb[0].mxu0
        %v1153 = vadd.f32 %v677, %v1152
        %v1154 = vpop.f32.mrb[0].mxu0
        %v1155 = vadd.f32 %v677, %v1154
        %1156 = vdwg.mxu0
        %v1157 = vmax.f32 %v1139, 0.0
        %v1158 = vmax.f32 %v1141, 0.0
        %v1159 = vmax.f32 %v1143, 0.0
        %v1160 = vmax.f32 %v1145, 0.0
        %v1161 = vmax.f32 %v1149, 0.0
        %v1162 = vmax.f32 %v1151, 0.0
        %v1163 = vmax.f32 %v1153, 0.0
        %v1164 = vmax.f32 %v1155, 0.0
        %v1165 = vpack.c.bf16 %v1159, %v1157
        %v1166 = vpack.c.bf16 %v1160, %v1158
        %v1167 = vpack.c.bf16 %v1163, %v1161
        %v1168 = vpack.c.bf16 %v1164, %v1162
        %1169 = vmatprep.subr.bf16.mxu0 %v1166
        %1170 = vmatpush1.bf16.msra.mxu0 %v1165
        %1171 = vmatprep.subr.bf16.mxu0 %v1168
        %1172 = vmatpush1.bf16.msra.mxu0 %v1167
        %1173 = vmatprep.subr.bf16.mxu0 0
        %1174 = vmatpush1.bf16.msra.mxu0 0
        %1175 = vmatprep.subr.bf16.mxu0 0
        %1176 = vmatpush1.bf16.msra.mxu0 0
        %1177 = vmatprep.subr.bf16.mxu0 0
        %1178 = vmatpush1.bf16.msra.mxu0 0
        %1179 = vmatprep.subr.bf16.mxu0 0
        %1180 = vmatpush1.bf16.msra.mxu0 0
        %1181 = vmatprep.subr.bf16.mxu0 0
        %1182 = vmatpush1.bf16.msra.mxu0 0
        %1183 = vmatprep.subr.bf16.mxu0 0
        %1184 = vmatpush1.bf16.msra.mxu0 0
        %1185 = vmatprep.subr.bf16.mxu0 0
        %1186 = vmatpush1.bf16.msra.mxu0 0
        %1187 = vmatprep.subr.bf16.mxu0 0
        %1188 = vmatpush1.bf16.msra.mxu0 0
        %1189 = vmatprep.subr.bf16.mxu0 0
        %1190 = vmatpush1.bf16.msra.mxu0 0
        %1191 = vmatprep.subr.bf16.mxu0 0
        %1192 = vmatpush1.bf16.msra.mxu0 0
        %1193 = vmatprep.subr.bf16.mxu0 0
        %1194 = vmatpush1.bf16.msra.mxu0 0
        %1195 = vmatprep.subr.bf16.mxu0 0
        %1196 = vmatpush1.bf16.msra.mxu0 0
        %1197 = vmatprep.subr.bf16.mxu0 0
        %1198 = vmatpush1.bf16.msra.mxu0 0
        %1199 = vmatprep.subr.bf16.mxu0 0
        %1200 = vmatpush1.bf16.msra.mxu0 0
        %1201 = vmatprep.mubr.bf16.mxu0 0
        %1202 = vmatmul.mubr.bf16.gmra.mrb[0].mxu0 %v772
        %v1203 = vpop.f32.mrb[0].mxu0
        %v1204 = vadd.f32 %v769, %v1203
        %v1205 = vpop.f32.mrb[0].mxu0
        %v1206 = vadd.f32 %v769, %v1205
        %v1207 = vpop.f32.mrb[0].mxu0
        %v1208 = vpop.f32.mrb[0].mxu0
        %1209 = vdwg.mxu0
        %v1212 = vcombine.low %v1204, %v1206
        %v1214 = vunpack.c.l.s4 1966171168
        %v1215 = vunpack.c.0.s8 %v1214
        %v1216 = vlaneseq
        %v1217 = vshrl.u32 %v1216, 7
        %v1218 = vsub.s32 %v1215, %v1217
        %v1219 = vrot.slane %v1212, %v1218
        %v1221 = vunpack.c.l.s4 1966171168
        %v1222 = vunpack.c.0.s8 %v1221
        %v1223 = vlaneseq
        %v1224 = vshrl.u32 %v1223, 7
        %v1225 = vsub.s32 %v1222, %v1224
        %v1226 = vrot.slane %v1219, %v1225
        %s1228 = scalar_lea.vmem %s286, 2 [#allocation3]
        %1229 = vst.msk [vmem:[%s1228] sm:$0x3] %vm836, %v1226
        %s1230 = sand.u32 %s183, 1
        %s1231 = scalar_lea.sflag [#allocation4], %s1230
        %s1232 = sand.u32 %s183, 1
        %s1233 = smul.addr %s1232, 4
        %s1234 = scalar_lea.vmem [#allocation3], %s1233
        // Predicated region
        $region49: #{tpu_custom_call.1} parent=47 // pred_check
          %p1235 = pneg %p193
        $region50: #{tpu_custom_call.1} parent=47 // pred_check_branch
          %1237 = sbr.rel (%p1235) target = $region52
        $region51: #{tpu_custom_call.1} parent=47 // pred_region
          %s1238 = smul.u32 4, %s23
          %s1240 = ssub.s32 64, 64
          %1241 = vsyncadd %s1231, %s1240
          %s1242 = smul.addr %s1238, 16
          %s1243 = scalar_lea.hbm %s7, %s1242
          %s1245 = sshll.u32 %s1234, 4
          %s1246 = int_to_ptr.vmem [resolvable:$true] %s1245
          %1248 = dma.vmem_to_hbm [thread:$0]  %s1246, 64, %s1243, %s1231
        $region52: #{tpu_custom_call.1} parent=47 // pred_fallthru
          _
      $region48: #{tpu_custom_call.1} parent=5 // pred_fallthru
        _
      %p1249 = scmp.le.s32.totalorder 2, %s18
      // Predicated region
      $region53: #{tpu_custom_call.1} parent=5 // pred_check
        %p1250 = pneg %p1249
      $region54: #{tpu_custom_call.1} parent=5 // pred_check_branch
        %1252 = sbr.rel (%p1250) target = $region56
      $region55: #{tpu_custom_call.1} parent=5 // pred_region
        %s1253 = ssub.s32 %s18, 2
        // Predicated region
        $region57: #{tpu_custom_call.1} parent=55 // pred_check
          %p1254 = pneg %p199
        $region58: #{tpu_custom_call.1} parent=55 // pred_check_branch
          %1256 = sbr.rel (%p1254) target = $region60
        $region59: #{tpu_custom_call.1} parent=55 // pred_region
          %s1257 = sand.u32 %s184, 1
          %s1258 = scalar_lea.sflag [#allocation4], %s1257
          %s1259 = sand.u32 %s184, 1
          %s1260 = smul.addr %s1259, 4
          %s1261 = scalar_lea.vmem [#allocation3], %s1260
          %1262 = dma.done %s1258, 64
        $region60: #{tpu_custom_call.1} parent=55 // pred_fallthru
          _
      $region56: #{tpu_custom_call.1} parent=5 // pred_fallthru
        _
    $region6: #{tpu_custom_call.1} parent=1 // loop_footer
      %s22 = sadd.s32 1, %s18
    $region7: #{tpu_custom_call.1} parent=1 // loop_footer_branch
      %17 = sbr.rel target = $region3
    $region8: #{tpu_custom_call.1} parent=1 // loop_exit
      _
    %1263 = vsyncpa [#allocation4], 1
    %s1264 = scalar_lea.sflag [#allocation4], 1
    %1265 = vsyncpa %s1264, 1

</llo_original>
